<compile_context>
chip_gen: v5e
topology: v5e:2x2
jax: 0.10.0
libtpu: 0.0.40
codegen_flags: <defaults>
</compile_context>

<pallas_src>
import jax
import jax.numpy as jnp
from jax.experimental import pallas as pl
from jax.experimental.pallas import tpu as pltpu

_LANE = 128
_FALLBACK_VMEM = 64 * 1024 * 1024  # conservative: v7x per-TC VMEM


def _round_up(x, m):
    return (x + m - 1) // m * m


def _vmem_capacity_bytes():
    try:
        info = pltpu.get_tpu_info()
        for name in ("vmem_capacity_bytes", "vmem_size_bytes"):
            cap = getattr(info, name, None)
            if cap:
                return int(cap)
    except Exception:
        pass
    return _FALLBACK_VMEM


def _pick_tiles(B, k_pad, n_pad, x_bytes, w_bytes, o_bytes, budget,
                tk_max=512, tn_max=512):
    """Largest (tk, tn) (multiples of 128, 256-aligned when possible) that fit
    the double-buffered block footprint inside `budget`."""
    cands = (1024, 512, 256, 128)

    def footprint(tk, tn):
        return (2 * B * tk * x_bytes        # x block, double-buffered
                + 2 * tk * tn * w_bytes     # W block, double-buffered
                + 2 * tn * 4                # bias block
                + 2 * B * tn * o_bytes      # output block
                + B * tn * 4)               # f32 accumulator scratch

    tn_opts = [c for c in cands if c <= tn_max and n_pad % c == 0] or [128]
    tk_opts = [c for c in cands if c <= tk_max and k_pad % c == 0] or [128]
    for tn in tn_opts:
        for tk in tk_opts:
            if footprint(tk, tn) <= budget:
                return tk, tn
    return 128, 128


def _linear_kernel(x_ref, w_ref, b_ref, o_ref, acc_ref):
    """Grid = (N tiles [parallel], K tiles [arbitrary]).
    acc_ref is a resident f32 accumulator; bias + dtype cast at the last K step."""
    k = pl.program_id(1)

    @pl.when(k == 0)
    def _init():
        acc_ref[...] = jnp.zeros_like(acc_ref)

    acc_ref[...] += jnp.dot(x_ref[...], w_ref[...],
                            preferred_element_type=jnp.float32)

    @pl.when(k == pl.num_programs(1) - 1)
    def _store():
        o_ref[...] = (acc_ref[...] + b_ref[...]).astype(o_ref.dtype)


def prepare_linear_params(weight, bias, *, compute_dtype=None):
    """One-time (init) transform of nn.Linear params.

    weight: (out_features, in_features)  ->  (K_pad, N_pad), lane/sublane padded
    bias:   (out_features,)              ->  (1, N_pad) float32
    """
    out_features, in_features = weight.shape
    n_pad = _round_up(out_features, _LANE)
    k_pad = _round_up(in_features, _LANE)
    w_t = jnp.pad(weight.T, ((0, k_pad - in_features), (0, n_pad - out_features)))
    if compute_dtype is not None:
        # TODO(synk): for production sizes use bf16 (v6e/v7x), int8 (v5e) or fp8
        # (v7x) weights here — weight HBM traffic dominates at small batch.
        w_t = w_t.astype(compute_dtype)
    b2d = jnp.pad(bias.astype(jnp.float32),
                  (0, n_pad - out_features)).reshape(1, n_pad)
    return w_t, b2d, out_features, in_features


def linear_forward(x, w_t_pad, b2d, out_features, in_features):
    """Pallas equivalent of Linear.forward.

    x:        (B, C, H, W)  — flattened row-major, like torch x.view(B, -1)
    w_t_pad:  (K_pad, N_pad) pre-transposed / pre-padded weight
    b2d:      (1, N_pad) f32 bias
    returns   (B, out_features) in x.dtype
    """
    B = x.shape[0]
    x_flat = x.reshape(B, -1)
    assert x_flat.shape[1] == in_features
    k_pad, n_pad = w_t_pad.shape

    if k_pad != in_features:
        x_flat = jnp.pad(x_flat, ((0, 0), (0, k_pad - in_features)))
    x_flat = x_flat.astype(w_t_pad.dtype)  # no-op unless a compute_dtype was set

    vmem_cap = _vmem_capacity_bytes()
    block_budget = int(vmem_cap * 0.40)          # ~25 MiB on v7x, ~51 MiB on v5e/v6e
    vmem_limit = int(vmem_cap * 0.75)            # back the budget explicitly

    x_b = jnp.dtype(x_flat.dtype).itemsize
    w_b = jnp.dtype(w_t_pad.dtype).itemsize
    o_b = jnp.dtype(x.dtype).itemsize
    tk, tn = _pick_tiles(B, k_pad, n_pad, x_b, w_b, o_b, block_budget)

    # TODO(synk): if B grows past ~8, add an M grid axis (128/256 tiles, parallel);
    # at B=2 the kernel is GEMV-like and purely weight-streaming bound.
    grid = (n_pad // tn, k_pad // tk)

    out_p = pl.pallas_call(
        _linear_kernel,
        out_shape=jax.ShapeDtypeStruct((B, n_pad), x.dtype),
        grid_spec=pltpu.PrefetchScalarGridSpec(
            num_scalar_prefetch=0,
            grid=grid,
            in_specs=[
                pl.BlockSpec((B, tk), lambda j, k: (0, k)),    # x  K-chunk
                pl.BlockSpec((tk, tn), lambda j, k: (k, j)),   # W^T (K, N) tile
                pl.BlockSpec((1, tn), lambda j, k: (0, j)),    # bias N-chunk
            ],
            out_specs=pl.BlockSpec((B, tn), lambda j, k: (0, j)),
            scratch_shapes=[pltpu.VMEM((B, tn), jnp.float32)],
        ),
        compiler_params=pltpu.CompilerParams(
            dimension_semantics=("parallel", "arbitrary"),
            vmem_limit_bytes=vmem_limit,
        ),
    )(x_flat, w_t_pad, b2d)

    return out_p[:, :out_features]


if __name__ == "__main__":
    # Module config: input=[B, C, H, W], labels = out_features
    B, C, H, W = 2, 4, 16, 16
    labels = 10
    in_features = C * H * W  # 1024

    key = jax.random.PRNGKey(0)
    kx, kw, kb = jax.random.split(key, 3)

    x = jax.random.normal(kx, (B, C, H, W), dtype=jnp.float32)

    # Deterministic nn.Linear-style init: U(-1/sqrt(in), 1/sqrt(in))
    bound = 1.0 / jnp.sqrt(in_features)
    weight = jax.random.uniform(
        kw, (labels, in_features), minval=-bound, maxval=bound, dtype=jnp.float32
    )
    bias = jax.random.uniform(
        kb, (labels,), minval=-bound, maxval=bound, dtype=jnp.float32
    )

    # Init-time (amortized) weight/bias preparation.
    w_t_pad, b2d, n_out, k_in = prepare_linear_params(weight, bias)

    out = linear_forward(x, w_t_pad, b2d, n_out, k_in)
    out = jax.block_until_ready(out)

    # Reference check against plain JAX (same math as torch.nn.Linear).
    ref = x.reshape(B, -1) @ weight.T + bias
    assert out.shape == (B, labels)
    assert out.dtype == x.dtype
    assert jnp.allclose(out, ref, atol=1e-4, rtol=1e-4)

    print("KERNEL_OK")
</pallas_src>

<mosaic_0001>
module attributes {stable_mosaic.version = 11 : i64} {
  func.func @_linear_kernel(%arg0: i32, %arg1: i32, %arg2: memref<2x512xf32, #tpu.memory_space<vmem>>, %arg3: memref<512x128xf32, #tpu.memory_space<vmem>>, %arg4: memref<1x128xf32, #tpu.memory_space<vmem>>, %arg5: memref<2x128xf32, #tpu.memory_space<vmem>>, %arg6: memref<2x128xf32, #tpu.memory_space<vmem>>) attributes {dimension_semantics = [#tpu.dimension_semantics<parallel>, #tpu.dimension_semantics<arbitrary>], iteration_bounds = array<i64: 1, 2>, scalar_prefetch = 0 : i64, scratch_operands = 1 : i64, tpu.core_type = #tpu.core_type<tc>, window_params = [{transform_indices = @transform_0, window_bounds = array<i64: 2, 512>}, {transform_indices = @transform_1, window_bounds = array<i64: 512, 128>}, {transform_indices = @transform_2, window_bounds = array<i64: 1, 128>}, {transform_indices = @transform_3, window_bounds = array<i64: 2, 128>}]} {
    %c0_i32 = arith.constant 0 : i32
    %0 = arith.cmpi eq, %arg1, %c0_i32 : i32
    %1 = arith.extui %0 : i1 to i32
    %c0_i32_0 = arith.constant 0 : i32
    %2 = arith.cmpi ne, %1, %c0_i32_0 : i32
    scf.if %2 {
      %cst_9 = arith.constant 0.000000e+00 : f32
      %12 = vector.broadcast %cst_9 : f32 to vector<2x128xf32>
      %c0_10 = arith.constant 0 : index
      %c0_11 = arith.constant 0 : index
      %13 = vector.load %arg6[%c0_10, %c0_11] : memref<2x128xf32, #tpu.memory_space<vmem>>, vector<2x128xf32>
      tpu.vector_store %arg6[%c0_10, %c0_11], %12 {strides = array<i32>} : memref<2x128xf32, #tpu.memory_space<vmem>>, vector<2x128xf32>,
    } else {
    }
    %c0 = arith.constant 0 : index
    %c0_1 = arith.constant 0 : index
    %3 = vector.load %arg6[%c0, %c0_1] : memref<2x128xf32, #tpu.memory_space<vmem>>, vector<2x128xf32>
    %c0_2 = arith.constant 0 : index
    %c0_3 = arith.constant 0 : index
    %4 = vector.load %arg2[%c0_2, %c0_3] : memref<2x512xf32, #tpu.memory_space<vmem>>, vector<2x512xf32>
    %c0_4 = arith.constant 0 : index
    %c0_5 = arith.constant 0 : index
    %5 = vector.load %arg3[%c0_4, %c0_5] : memref<512x128xf32, #tpu.memory_space<vmem>>, vector<512x128xf32>
    %cst = arith.constant dense<0.000000e+00> : vector<2x128xf32>
    %6 = tpu.matmul %4, %5, %cst {dimension_numbers = #tpu.dot_dimension_numbers<[1], [0], [0], [1], [0, 0, 1, 1], [], []>} : vector<2x512xf32>, vector<512x128xf32>, vector<2x128xf32> -> vector<2x128xf32>
    %7 = arith.addf %3, %6 : vector<2x128xf32>
    %c0_6 = arith.constant 0 : index
    %c0_7 = arith.constant 0 : index
    %8 = vector.load %arg6[%c0_6, %c0_7] : memref<2x128xf32, #tpu.memory_space<vmem>>, vector<2x128xf32>
    tpu.vector_store %arg6[%c0_6, %c0_7], %7 {strides = array<i32>} : memref<2x128xf32, #tpu.memory_space<vmem>>, vector<2x128xf32>,
    %c1_i32 = arith.constant 1 : i32
    %9 = arith.cmpi eq, %arg1, %c1_i32 : i32
    %10 = arith.extui %9 : i1 to i32
    %c0_i32_8 = arith.constant 0 : i32
    %11 = arith.cmpi ne, %10, %c0_i32_8 : i32
    scf.if %11 {
      %c0_9 = arith.constant 0 : index
      %c0_10 = arith.constant 0 : index
      %12 = vector.load %arg6[%c0_9, %c0_10] : memref<2x128xf32, #tpu.memory_space<vmem>>, vector<2x128xf32>
      %c0_11 = arith.constant 0 : index
      %c0_12 = arith.constant 0 : index
      %13 = vector.load %arg4[%c0_11, %c0_12] : memref<1x128xf32, #tpu.memory_space<vmem>>, vector<1x128xf32>
      %14 = vector.broadcast %13 : vector<1x128xf32> to vector<2x128xf32>
      %15 = arith.addf %12, %14 : vector<2x128xf32>
      %c0_13 = arith.constant 0 : index
      %c0_14 = arith.constant 0 : index
      %16 = vector.load %arg5[%c0_13, %c0_14] : memref<2x128xf32, #tpu.memory_space<vmem>>, vector<2x128xf32>
      tpu.vector_store %arg5[%c0_13, %c0_14], %15 {strides = array<i32>} : memref<2x128xf32, #tpu.memory_space<vmem>>, vector<2x128xf32>,
    } else {
    }
    return
  }
  func.func @transform_0(%arg0: i32, %arg1: i32) -> (i32, i32) {
    %c0_i32 = arith.constant 0 : i32
    %c0_i32_0 = arith.constant 0 : i32
    return %c0_i32, %arg1 : i32, i32
  }
  func.func @transform_1(%arg0: i32, %arg1: i32) -> (i32, i32) {
    %c0_i32 = arith.constant 0 : i32
    return %arg1, %arg0 : i32, i32
  }
  func.func @transform_2(%arg0: i32, %arg1: i32) -> (i32, i32) {
    %c0_i32 = arith.constant 0 : i32
    %c0_i32_0 = arith.constant 0 : i32
    return %c0_i32, %arg0 : i32, i32
  }
  func.func @transform_3(%arg0: i32, %arg1: i32) -> (i32, i32) {
    %c0_i32 = arith.constant 0 : i32
    %c0_i32_0 = arith.constant 0 : i32
    return %c0_i32, %arg0 : i32, i32
  }
}

</mosaic_0001>

<llo_original>
// kernel: tpu_custom_call.1
$region0: #{tpu_custom_call.1}
  #allocation0 [shape = 'u32[]', space=smem, size = 0x4, offset = 0x4, fixed_abs, tag = 'smem constant byte address 0x4 - core index']
  #allocation1 [shape = 'u32[72,128]{1,0:T(1,128)}', space=vmem, size = 0x9000, scoped, tag = 'internal scratch']
  #allocation2 [shape = 'f32[2,128]{1,0:T(2,128)}', space=vmem, size = 0x400, scoped, tag = 'scratch operand']
  %s0 = inlined_call_operand.hbm [shape: f32[2,1024], index: 0, kind: input, shape index: {}]
  %s1 = inlined_call_operand.hbm [shape: f32[1024,128], index: 1, kind: input, shape index: {}]
  %s2 = inlined_call_operand.vmem [shape: f32[1,128], index: 2, kind: input, shape index: {}]
  %s3 = inlined_call_operand.hbm [shape: f32[2,128], index: 3, kind: output, shape index: {}]
  %s4 = sld [smem:[#allocation0]]
  $region61: #{tpu_custom_call.1} parent=0
    _
  %s6 = ssub.s32 1, %s4
  %s7 = scalar_select 0, %s6, %s4
  $region1: #{tpu_custom_call.1} parent=0
    #allocation3 [shape = 'u8[8192]{0}', space=vmem, size = 0x2000, scoped, tag = 'input window, operand 0']
    #allocation4 [shape = 's32[2]{0}', space=sflag, size = 0x8, scoped, tag = 'scoped memory for tpu_custom_call.1']
    #allocation5 [shape = 's32[2]{0}', space=sflag, size = 0x8, scoped, tag = 'scoped memory for tpu_custom_call.1']
    #allocation6 [shape = 'u8[524288]{0}', space=vmem, size = 0x80000, scoped, tag = 'input window, operand 1']
    #allocation7 [shape = 's32[2]{0}', space=sflag, size = 0x8, scoped, tag = 'scoped memory for tpu_custom_call.1']
    #allocation8 [shape = 'u8[1024]{0}', space=vmem, size = 0x400, scoped, tag = 'output window, operand 0, single buffered']
    %8 = vsyncpa [#allocation4], 0
    %s9 = scalar_lea.sflag [#allocation4], 1
    %10 = vsyncpa %s9, 0
    %11 = vsyncpa [#allocation7], 0
    %s12 = scalar_lea.sflag [#allocation7], 1
    %13 = vsyncpa %s12, 0
    %14 = vsyncpa [#allocation5], 0
    loop: start=0, step=1, limit=4
    $region2: #{tpu_custom_call.1} parent=1 // loop_pre_header
      _
    $region3: #{tpu_custom_call.1} parent=1 // loop_header
      %s16 = sphi 0, %s20
      %p17 = scmp.ge.s32.totalorder %s16, 4
      %s23 = sphi 0, %s35
      %s24 = sphi 0, %s31
      %s25 = sphi 0, %s23
      %s26 = sphi 0, %s24
      %s27 = sphi 0, %s25
      %s28 = sphi 0, %s26
      %s38 = sphi 0, %s40
      %s41 = sphi 0, %s38
      %s42 = sphi 0, %s41
      %s58 = sphi 0, %s42
      %s66 = sphi 0, %s68
      %s69 = sphi 0, %s66
      %s70 = sphi 0, %s69
      %s86 = sphi 0, %s70
      %s92 = sphi 0, %s94
      %s95 = sphi 0, %s92
      %s96 = sphi 0, %s95
      %s112 = sphi 0, %s96
      %s118 = sphi 0, %s120
      %s121 = sphi 0, %s118
      %s122 = sphi 0, %s121
      %s138 = sphi 0, %s122
    $region4: #{tpu_custom_call.1} parent=1 // loop_header_branch
      %19 = sbr.rel (%p17) target = $region8
    $region5: #{tpu_custom_call.1} parent=1 // loop_body
      %s21 = ssub.s32 %s16, 1
      %s22 = ssub.s32 %s16, 2
      %s29 = sadd.s32 1, %s24
      %p30 = scmp.ge.s32.totalorder %s29, 2
      %s31 = scalar_select %p30, 0, %s29
      %s32 = sadd.s32 1, %s23
      %s33 = scalar_select %p30, %s32, %s23
      %p34 = scmp.ge.s32.totalorder %s33, 1
      %s35 = scalar_select %p34, 0, %s33
      %s36 = ssub.s32 %s24, %s31
      %p37 = scmp.eq.s32.totalorder %s36, 0
      %s39 = sadd.s32 %s38, 1
      %s40 = scalar_select %p37, %s38, %s39
      %p43 = pneg %p37
      %p44 = scmp.eq.s32.totalorder %s16, 1
      %p45 = por %p43, %p44
      %p46 = scmp.ne.s32.totalorder %s38, %s41
      %p47 = scmp.eq.s32.totalorder %s16, 0
      %p48 = por %p46, %p47
      %p49 = scmp.ne.s32.totalorder %s38, %s41
      %p50 = scmp.eq.s32.totalorder %s21, 1
      %p51 = por %p49, %p50
      %p52 = scmp.ne.s32.totalorder %s41, %s42
      %p53 = scmp.eq.s32.totalorder %s21, 0
      %p54 = por %p52, %p53
      %p55 = scmp.ne.s32.totalorder %s41, %s42
      %p56 = scmp.eq.s32.totalorder %s22, 1
      %p57 = por %p55, %p56
      %p59 = scmp.ne.s32.totalorder %s42, %s58
      %p60 = scmp.eq.s32.totalorder %s22, 0
      %p61 = por %p59, %p60
      %s62 = ssub.s32 %s24, %s31
      %s63 = ssub.s32 %s23, %s35
      %s64 = sor.u32 %s62, %s63
      %p65 = scmp.eq.s32.totalorder %s64, 0
      %s67 = sadd.s32 %s66, 1
      %s68 = scalar_select %p65, %s66, %s67
      %p71 = pneg %p65
      %p72 = scmp.eq.s32.totalorder %s16, 1
      %p73 = por %p71, %p72
      %p74 = scmp.ne.s32.totalorder %s66, %s69
      %p75 = scmp.eq.s32.totalorder %s16, 0
      %p76 = por %p74, %p75
      %p77 = scmp.ne.s32.totalorder %s66, %s69
      %p78 = scmp.eq.s32.totalorder %s21, 1
      %p79 = por %p77, %p78
      %p80 = scmp.ne.s32.totalorder %s69, %s70
      %p81 = scmp.eq.s32.totalorder %s21, 0
      %p82 = por %p80, %p81
      %p83 = scmp.ne.s32.totalorder %s69, %s70
      %p84 = scmp.eq.s32.totalorder %s22, 1
      %p85 = por %p83, %p84
      %p87 = scmp.ne.s32.totalorder %s70, %s86
      %p88 = scmp.eq.s32.totalorder %s22, 0
      %p89 = por %p87, %p88
      %s90 = ssub.s32 %s23, %s35
      %p91 = scmp.eq.s32.totalorder %s90, 0
      %s93 = sadd.s32 %s92, 1
      %s94 = scalar_select %p91, %s92, %s93
      %p97 = pneg %p91
      %p98 = scmp.eq.s32.totalorder %s16, 1
      %p99 = por %p97, %p98
      %p100 = scmp.ne.s32.totalorder %s92, %s95
      %p101 = scmp.eq.s32.totalorder %s16, 0
      %p102 = por %p100, %p101
      %p103 = scmp.ne.s32.totalorder %s92, %s95
      %p104 = scmp.eq.s32.totalorder %s21, 1
      %p105 = por %p103, %p104
      %p106 = scmp.ne.s32.totalorder %s95, %s96
      %p107 = scmp.eq.s32.totalorder %s21, 0
      %p108 = por %p106, %p107
      %p109 = scmp.ne.s32.totalorder %s95, %s96
      %p110 = scmp.eq.s32.totalorder %s22, 1
      %p111 = por %p109, %p110
      %p113 = scmp.ne.s32.totalorder %s96, %s112
      %p114 = scmp.eq.s32.totalorder %s22, 0
      %p115 = por %p113, %p114
      %s116 = ssub.s32 %s23, %s35
      %p117 = scmp.eq.s32.totalorder %s116, 0
      %s119 = sadd.s32 %s118, 1
      %s120 = scalar_select %p117, %s118, %s119
      %p123 = pneg %p117
      %p124 = scmp.eq.s32.totalorder %s16, 1
      %p125 = por %p123, %p124
      %p126 = scmp.ne.s32.totalorder %s118, %s121
      %p127 = scmp.eq.s32.totalorder %s16, 0
      %p128 = por %p126, %p127
      %p129 = scmp.ne.s32.totalorder %s118, %s121
      %p130 = scmp.eq.s32.totalorder %s21, 1
      %p131 = por %p129, %p130
      %p132 = scmp.ne.s32.totalorder %s121, %s122
      %p133 = scmp.eq.s32.totalorder %s21, 0
      %p134 = por %p132, %p133
      %p135 = scmp.ne.s32.totalorder %s121, %s122
      %p136 = scmp.eq.s32.totalorder %s22, 1
      %p137 = por %p135, %p136
      %p139 = scmp.ne.s32.totalorder %s122, %s138
      %p140 = scmp.eq.s32.totalorder %s22, 0
      %p141 = por %p139, %p140
      %p142 = scmp.le.s32.totalorder 1, %s16
      %p143 = scmp.lt.s32.totalorder %s16, 3
      %p144 = pnand %p142, %p143
      %p145 = pneg %p144
      // Predicated region
      $region9: #{tpu_custom_call.1} parent=5 // pred_check
        _
      $region10: #{tpu_custom_call.1} parent=5 // pred_check_branch
        %147 = sbr.rel (%p144) target = $region12
      $region11: #{tpu_custom_call.1} parent=5 // pred_region
        %s148 = ssub.s32 %s16, 1
        // Predicated region
        $region13: #{tpu_custom_call.1} parent=11 // pred_check
          %p149 = pneg %p108
        $region14: #{tpu_custom_call.1} parent=11 // pred_check_branch
          %151 = sbr.rel (%p149) target = $region16
        $region15: #{tpu_custom_call.1} parent=11 // pred_region
          %p152 = scmp.lt.s32.totalorder %s25, 0
          %s153 = scalar_select %p152, %s25, 0
          %s154 = scalar_lea.vmem %s2, %s153
        $region16: #{tpu_custom_call.1} parent=11 // pred_fallthru
          _
      $region12: #{tpu_custom_call.1} parent=5 // pred_fallthru
        _
      %p155 = scmp.lt.s32.totalorder %s16, 2
      // Predicated region
      $region17: #{tpu_custom_call.1} parent=5 // pred_check
        %p156 = pneg %p155
      $region18: #{tpu_custom_call.1} parent=5 // pred_check_branch
        %158 = sbr.rel (%p156) target = $region20
      $region19: #{tpu_custom_call.1} parent=5 // pred_region
        // Predicated region
        $region21: #{tpu_custom_call.1} parent=19 // pred_check
          %p159 = pneg %p48
        $region22: #{tpu_custom_call.1} parent=19 // pred_check_branch
          %161 = sbr.rel (%p159) target = $region24
        $region23: #{tpu_custom_call.1} parent=19 // pred_region
          %s162 = sand.u32 %s38, 1
          %s163 = scalar_lea.sflag [#allocation4], %s162
          %s164 = sand.u32 %s38, 1
          %s165 = smul.addr %s164, 8
          %s166 = scalar_lea.vmem [#allocation3], %s165
          %s167 = smul.u32 4, %s24
          %169 = vsyncadd %s163, 0
          %s170 = smul.addr %s167, 2
          %s171 = scalar_lea.hbm %s0, %s170
          %s173 = sshll.u32 %s171, 4
          %s174 = int_to_ptr.hbm [resolvable:$true] %s173
          %s175 = sshll.u32 %s166, 4
          %s176 = int_to_ptr.vmem [resolvable:$true] %s175
          %178 = dma.hbm_to_vmem [thread:$0]  %s174, 128, %s176, %s163
        $region24: #{tpu_custom_call.1} parent=19 // pred_fallthru
          _
        // Predicated region
        $region25: #{tpu_custom_call.1} parent=19 // pred_check
          %p179 = pneg %p76
        $region26: #{tpu_custom_call.1} parent=19 // pred_check_branch
          %181 = sbr.rel (%p179) target = $region28
        $region27: #{tpu_custom_call.1} parent=19 // pred_region
          %s182 = sand.u32 %s66, 1
          %s183 = scalar_lea.sflag [#allocation7], %s182
          %s184 = sand.u32 %s66, 1
          %s185 = smul.addr %s184, 512
          %s186 = scalar_lea.vmem [#allocation6], %s185
          %s187 = smul.u32 64, %s24
          %189 = vsyncadd %s183, 0
          %s190 = sadd.s32 %s23, %s187
          %s191 = smul.addr %s190, 8
          %s192 = scalar_lea.hbm %s1, %s191
          %s193 = sshll.u32 %s192, 4
          %s194 = int_to_ptr.hbm [resolvable:$true] %s193
          %s195 = sshll.u32 %s186, 4
          %s196 = int_to_ptr.vmem [resolvable:$true] %s195
          %201 = dma.hbm_to_vmem [thread:$0]  %s194, 8192, %s196, %s183, 128, 128, 8
        $region28: #{tpu_custom_call.1} parent=19 // pred_fallthru
          _
      $region20: #{tpu_custom_call.1} parent=5 // pred_fallthru
        _
      %p202 = scmp.le.s32.totalorder 1, %s16
      %p203 = scmp.lt.s32.totalorder %s16, 3
      %p204 = pnand %p202, %p203
      %p205 = pneg %p204
      // Predicated region
      $region29: #{tpu_custom_call.1} parent=5 // pred_check
        _
      $region30: #{tpu_custom_call.1} parent=5 // pred_check_branch
        %207 = sbr.rel (%p204) target = $region32
      $region31: #{tpu_custom_call.1} parent=5 // pred_region
        %s208 = ssub.s32 %s16, 1
        %s209 = sand.u32 %s41, 1
        %s210 = scalar_lea.sflag [#allocation4], %s209
        %s211 = sand.u32 %s41, 1
        %s212 = smul.addr %s211, 8
        %s213 = scalar_lea.vmem [#allocation3], %s212
        // Predicated region
        $region33: #{tpu_custom_call.1} parent=31 // pred_check
          %p214 = pneg %p54
        $region34: #{tpu_custom_call.1} parent=31 // pred_check_branch
          %216 = sbr.rel (%p214) target = $region36
        $region35: #{tpu_custom_call.1} parent=31 // pred_region
          %218 = dma.done %s210, 128
        $region36: #{tpu_custom_call.1} parent=31 // pred_fallthru
          _
        %s219 = sand.u32 %s69, 1
        %s220 = scalar_lea.sflag [#allocation7], %s219
        %s221 = sand.u32 %s69, 1
        %s222 = smul.addr %s221, 512
        %s223 = scalar_lea.vmem [#allocation6], %s222
        // Predicated region
        $region37: #{tpu_custom_call.1} parent=31 // pred_check
          %p224 = pneg %p82
        $region38: #{tpu_custom_call.1} parent=31 // pred_check_branch
          %226 = sbr.rel (%p224) target = $region40
        $region39: #{tpu_custom_call.1} parent=31 // pred_region
          %228 = dma.done %s220, 8192
        $region40: #{tpu_custom_call.1} parent=31 // pred_fallthru
          _
        %s229 = sand.u32 %s41, 1
        %s230 = scalar_lea.sflag [#allocation4], %s229
        %s231 = sand.u32 %s41, 1
        %s232 = smul.addr %s231, 8
        %s233 = scalar_lea.vmem [#allocation3], %s232
        %p234 = pneg %p54
        %p235 = pneg %p51
        %s236 = sand.u32 %s69, 1
        %s237 = scalar_lea.sflag [#allocation7], %s236
        %s238 = sand.u32 %s69, 1
        %s239 = smul.addr %s238, 512
        %s240 = scalar_lea.vmem [#allocation6], %s239
        %p241 = pneg %p82
        %p242 = pneg %p79
        %p243 = scmp.lt.s32.totalorder %s25, 0
        %s244 = scalar_select %p243, %s25, 0
        %s245 = scalar_lea.vmem %s2, %s244
        %p246 = pneg %p108
        %p247 = pneg %p105
        %p248 = pneg %p134
        %p249 = pneg %p131
        %s250 = smul.u32 4, %s26
        %s251 = smul.u32 64, %s26
        %p252 = scmp.lt.s32.totalorder %s25, 0
        %s253 = scalar_select %p252, %s25, 0
        %s254 = scalar_lea.vmem %s2, %s253
        %p255 = scmp.eq.s32.totalorder %s26, 0
        // Predicated region
        $region41: #{tpu_custom_call.1} parent=31 // pred_check
          %p256 = pneg %p255
        $region42: #{tpu_custom_call.1} parent=31 // pred_check_branch
          %258 = sbr.rel (%p256) target = $region44
        $region43: #{tpu_custom_call.1} parent=31 // pred_region
          %259 = vst [vmem:[#allocation2] sm:$0x3] 0.0
        $region44: #{tpu_custom_call.1} parent=31 // pred_fallthru
          _
        %v260 = vld [vmem:[#allocation2] sm:$0x3]
        %v261 = vld [vmem:[%s213] sm:$0xff]
        %v262 = vld [vmem:[%s223] sm:$0xff]
        %v263 = vld [vmem:[%s223 + $0x8] sm:$0xff]
        %v264 = vld [vmem:[%s223 + $0x10] sm:$0xff]
        %v265 = vld [vmem:[%s223 + $0x18] sm:$0xff]
        %v266 = vld [vmem:[%s223 + $0x20] sm:$0xff]
        %v267 = vld [vmem:[%s223 + $0x28] sm:$0xff]
        %v268 = vld [vmem:[%s223 + $0x30] sm:$0xff]
        %v269 = vld [vmem:[%s223 + $0x38] sm:$0xff]
        %v270 = vld [vmem:[%s223 + $0x40] sm:$0xff]
        %v271 = vld [vmem:[%s223 + $0x48] sm:$0xff]
        %v272 = vld [vmem:[%s223 + $0x50] sm:$0xff]
        %v273 = vld [vmem:[%s223 + $0x58] sm:$0xff]
        %v274 = vld [vmem:[%s223 + $0x60] sm:$0xff]
        %v275 = vld [vmem:[%s223 + $0x68] sm:$0xff]
        %v276 = vld [vmem:[%s223 + $0x70] sm:$0xff]
        %v277 = vld [vmem:[%s223 + $0x78] sm:$0xff]
        %v278 = vld [vmem:[%s223 + $0x80] sm:$0xff]
        %v279 = vld [vmem:[%s223 + $0x88] sm:$0xff]
        %v280 = vld [vmem:[%s223 + $0x90] sm:$0xff]
        %v281 = vld [vmem:[%s223 + $0x98] sm:$0xff]
        %v282 = vld [vmem:[%s223 + $0xa0] sm:$0xff]
        %v283 = vld [vmem:[%s223 + $0xa8] sm:$0xff]
        %v284 = vld [vmem:[%s223 + $0xb0] sm:$0xff]
        %v285 = vld [vmem:[%s223 + $0xb8] sm:$0xff]
        %v286 = vld [vmem:[%s223 + $0xc0] sm:$0xff]
        %v287 = vld [vmem:[%s223 + $0xc8] sm:$0xff]
        %v288 = vld [vmem:[%s223 + $0xd0] sm:$0xff]
        %v289 = vld [vmem:[%s223 + $0xd8] sm:$0xff]
        %v290 = vld [vmem:[%s223 + $0xe0] sm:$0xff]
        %v291 = vld [vmem:[%s223 + $0xe8] sm:$0xff]
        %v292 = vld [vmem:[%s223 + $0xf0] sm:$0xff]
        %v293 = vld [vmem:[%s223 + $0xf8] sm:$0xff]
        %v294 = vld [vmem:[%s223 + $0x100] sm:$0xff]
        %v295 = vld [vmem:[%s223 + $0x108] sm:$0xff]
        %v296 = vld [vmem:[%s223 + $0x110] sm:$0xff]
        %v297 = vld [vmem:[%s223 + $0x118] sm:$0xff]
        %v298 = vld [vmem:[%s223 + $0x120] sm:$0xff]
        %v299 = vld [vmem:[%s223 + $0x128] sm:$0xff]
        %v300 = vld [vmem:[%s223 + $0x130] sm:$0xff]
        %v301 = vld [vmem:[%s223 + $0x138] sm:$0xff]
        %v302 = vld [vmem:[%s223 + $0x140] sm:$0xff]
        %v303 = vld [vmem:[%s223 + $0x148] sm:$0xff]
        %v304 = vld [vmem:[%s223 + $0x150] sm:$0xff]
        %v305 = vld [vmem:[%s223 + $0x158] sm:$0xff]
        %v306 = vld [vmem:[%s223 + $0x160] sm:$0xff]
        %v307 = vld [vmem:[%s223 + $0x168] sm:$0xff]
        %v308 = vld [vmem:[%s223 + $0x170] sm:$0xff]
        %v309 = vld [vmem:[%s223 + $0x178] sm:$0xff]
        %v310 = vld [vmem:[%s223 + $0x180] sm:$0xff]
        %v311 = vld [vmem:[%s223 + $0x188] sm:$0xff]
        %v312 = vld [vmem:[%s223 + $0x190] sm:$0xff]
        %v313 = vld [vmem:[%s223 + $0x198] sm:$0xff]
        %v314 = vld [vmem:[%s223 + $0x1a0] sm:$0xff]
        %v315 = vld [vmem:[%s223 + $0x1a8] sm:$0xff]
        %v316 = vld [vmem:[%s223 + $0x1b0] sm:$0xff]
        %v317 = vld [vmem:[%s223 + $0x1b8] sm:$0xff]
        %v318 = vld [vmem:[%s223 + $0x1c0] sm:$0xff]
        %v319 = vld [vmem:[%s223 + $0x1c8] sm:$0xff]
        %v320 = vld [vmem:[%s223 + $0x1d0] sm:$0xff]
        %v321 = vld [vmem:[%s223 + $0x1d8] sm:$0xff]
        %v322 = vld [vmem:[%s223 + $0x1e0] sm:$0xff]
        %v323 = vld [vmem:[%s223 + $0x1e8] sm:$0xff]
        %v324 = vld [vmem:[%s223 + $0x1f0] sm:$0xff]
        %v325 = vld [vmem:[%s223 + $0x1f8] sm:$0xff]
        %327 = vst [vmem:[#allocation1] ss:$4 sm:$0xff] %v261
        %v328 = vld.sshfl [vmem:[#allocation1] sm:$0xff pattern:$0x73625140]
        %v329 = vld.sshfl [vmem:[#allocation1 + $0x8] sm:$0xff pattern:$0x73625140]
        %v330 = vld.sshfl [vmem:[#allocation1 + $0x10] sm:$0xff pattern:$0x73625140]
        %v331 = vld.sshfl [vmem:[#allocation1 + $0x18] sm:$0xff pattern:$0x73625140]
        %336 = vmatpush.msra.mxu0 %v277
        %337 = vmatpush.msra.mxu0 %v276
        %338 = vmatpush.msra.mxu0 %v275
        %339 = vmatpush.msra.mxu0 %v274
        %340 = vmatpush.msra.mxu0 %v273
        %341 = vmatpush.msra.mxu0 %v272
        %342 = vmatpush.msra.mxu0 %v271
        %343 = vmatpush.msra.mxu0 %v270
        %344 = vmatpush.msra.mxu0 %v269
        %345 = vmatpush.msra.mxu0 %v268
        %346 = vmatpush.msra.mxu0 %v267
        %347 = vmatpush.msra.mxu0 %v266
        %348 = vmatpush.msra.mxu0 %v265
        %349 = vmatpush.msra.mxu0 %v264
        %350 = vmatpush.msra.mxu0 %v263
        %351 = vmatpush.msra.mxu0 %v262
        %352 = vmatmul.f32.gmra.mxu0 %v328
        %v353 = vpop.f32.mrf.mxu0
        %v354 = vadd.f32 0.0, %v353
        %355 = vdwg.mxu0
        %356 = vmatpush.msra.mxu0 %v293
        %357 = vmatpush.msra.mxu0 %v292
        %358 = vmatpush.msra.mxu0 %v291
        %359 = vmatpush.msra.mxu0 %v290
        %360 = vmatpush.msra.mxu0 %v289
        %361 = vmatpush.msra.mxu0 %v288
        %362 = vmatpush.msra.mxu0 %v287
        %363 = vmatpush.msra.mxu0 %v286
        %364 = vmatpush.msra.mxu0 %v285
        %365 = vmatpush.msra.mxu0 %v284
        %366 = vmatpush.msra.mxu0 %v283
        %367 = vmatpush.msra.mxu0 %v282
        %368 = vmatpush.msra.mxu0 %v281
        %369 = vmatpush.msra.mxu0 %v280
        %370 = vmatpush.msra.mxu0 %v279
        %371 = vmatpush.msra.mxu0 %v278
        %372 = vmatmul.f32.gmra.mxu0 %v329
        %v373 = vpop.f32.mrf.mxu0
        %v374 = vadd.f32 %v354, %v373
        %375 = vdwg.mxu0
        %376 = vmatpush.msra.mxu0 %v309
        %377 = vmatpush.msra.mxu0 %v308
        %378 = vmatpush.msra.mxu0 %v307
        %379 = vmatpush.msra.mxu0 %v306
        %380 = vmatpush.msra.mxu0 %v305
        %381 = vmatpush.msra.mxu0 %v304
        %382 = vmatpush.msra.mxu0 %v303
        %383 = vmatpush.msra.mxu0 %v302
        %384 = vmatpush.msra.mxu0 %v301
        %385 = vmatpush.msra.mxu0 %v300
        %386 = vmatpush.msra.mxu0 %v299
        %387 = vmatpush.msra.mxu0 %v298
        %388 = vmatpush.msra.mxu0 %v297
        %389 = vmatpush.msra.mxu0 %v296
        %390 = vmatpush.msra.mxu0 %v295
        %391 = vmatpush.msra.mxu0 %v294
        %392 = vmatmul.f32.gmra.mxu0 %v330
        %v393 = vpop.f32.mrf.mxu0
        %v394 = vadd.f32 %v374, %v393
        %395 = vdwg.mxu0
        %396 = vmatpush.msra.mxu0 %v325
        %397 = vmatpush.msra.mxu0 %v324
        %398 = vmatpush.msra.mxu0 %v323
        %399 = vmatpush.msra.mxu0 %v322
        %400 = vmatpush.msra.mxu0 %v321
        %401 = vmatpush.msra.mxu0 %v320
        %402 = vmatpush.msra.mxu0 %v319
        %403 = vmatpush.msra.mxu0 %v318
        %404 = vmatpush.msra.mxu0 %v317
        %405 = vmatpush.msra.mxu0 %v316
        %406 = vmatpush.msra.mxu0 %v315
        %407 = vmatpush.msra.mxu0 %v314
        %408 = vmatpush.msra.mxu0 %v313
        %409 = vmatpush.msra.mxu0 %v312
        %410 = vmatpush.msra.mxu0 %v311
        %411 = vmatpush.msra.mxu0 %v310
        %412 = vmatmul.f32.gmra.mxu0 %v331
        %v413 = vpop.f32.mrf.mxu0
        %v414 = vadd.f32 %v394, %v413
        %415 = vdwg.mxu0
        %v416 = vadd.f32 %v260, %v414
        %417 = vst [vmem:[#allocation2] sm:$0x3] %v416
        %p418 = scmp.eq.s32.totalorder %s26, 1
        // Predicated region
        $region45: #{tpu_custom_call.1} parent=31 // pred_check
          %p419 = pneg %p418
        $region46: #{tpu_custom_call.1} parent=31 // pred_check_branch
          %421 = sbr.rel (%p419) target = $region48
        $region47: #{tpu_custom_call.1} parent=31 // pred_region
          %v422 = vld [vmem:[#allocation2] sm:$0x3]
          %v423 = vld [vmem:[%s254] sm:$0x1]
          %v425 = vperm.slane %v423, 0
          %v427 = vadd.f32 %v422, %v425
          %428 = vst [vmem:[#allocation8] sm:$0x3] %v427
        $region48: #{tpu_custom_call.1} parent=31 // pred_fallthru
          _
        // Predicated region
        $region49: #{tpu_custom_call.1} parent=31 // pred_check
          %p429 = pneg %p131
        $region50: #{tpu_custom_call.1} parent=31 // pred_check_branch
          %431 = sbr.rel (%p429) target = $region52
        $region51: #{tpu_custom_call.1} parent=31 // pred_region
          %433 = vsyncadd [#allocation5], 0
          %s434 = smul.addr %s25, 2
          %s435 = scalar_lea.hbm %s3, %s434
          %s437 = sshll.u32 [#allocation8], 4
          %s438 = int_to_ptr.vmem [resolvable:$true] %s437
          %s439 = sshll.u32 %s435, 4
          %s440 = int_to_ptr.hbm [resolvable:$true] %s439
          %442 = dma.vmem_to_hbm [thread:$0]  %s438, 32, %s440, [#allocation5]
        $region52: #{tpu_custom_call.1} parent=31 // pred_fallthru
          _
        // Predicated region
        $region53: #{tpu_custom_call.1} parent=31 // pred_check
          %p443 = pneg %p131
        $region54: #{tpu_custom_call.1} parent=31 // pred_check_branch
          %445 = sbr.rel (%p443) target = $region56
        $region55: #{tpu_custom_call.1} parent=31 // pred_region
          %447 = dma.done [#allocation5], 32
        $region56: #{tpu_custom_call.1} parent=31 // pred_fallthru
          _
      $region32: #{tpu_custom_call.1} parent=5 // pred_fallthru
        _
      %p448 = scmp.le.s32.totalorder 2, %s16
      // Predicated region
      $region57: #{tpu_custom_call.1} parent=5 // pred_check
        %p449 = pneg %p448
      $region58: #{tpu_custom_call.1} parent=5 // pred_check_branch
        %451 = sbr.rel (%p449) target = $region60
      $region59: #{tpu_custom_call.1} parent=5 // pred_region
        %s452 = ssub.s32 %s16, 2
      $region60: #{tpu_custom_call.1} parent=5 // pred_fallthru
        _
    $region6: #{tpu_custom_call.1} parent=1 // loop_footer
      %s20 = sadd.s32 1, %s16
    $region7: #{tpu_custom_call.1} parent=1 // loop_footer_branch
      %15 = sbr.rel target = $region3
    $region8: #{tpu_custom_call.1} parent=1 // loop_exit
      _
    %453 = vsyncpa [#allocation4], 1
    %s454 = scalar_lea.sflag [#allocation4], 1
    %455 = vsyncpa %s454, 1
    %456 = vsyncpa [#allocation7], 1
    %s457 = scalar_lea.sflag [#allocation7], 1
    %458 = vsyncpa %s457, 1
    %459 = vsyncpa [#allocation5], 1
    %s460 = scalar_lea.sflag [#allocation5], 1
    %461 = vsyncpa %s460, 1

</llo_original>
